<compile_context>
chip_gen: v7x
topology: tpu7x:2x2x1
jax: 0.10.0
libtpu: 0.0.40
codegen_flags: <defaults>
</compile_context>

<pallas_src>
import jax
import jax.numpy as jnp
from jax import lax
from jax.experimental import pallas as pl
from jax.experimental.pallas import tpu as pltpu


def _round_up(x, m):
    return ((x + m - 1) // m) * m


def _physical_vmem_bytes():
    """Per-TensorCore VMEM capacity; conservative 64 MiB (v7x) if unknown."""
    try:
        return int(pltpu.get_tpu_info().vmem_capacity_bytes)
    except Exception:
        return 64 << 20


def _vmem_need_bytes(tm, D, H, Dout, x_it, w_it, o_it, x_bufs):
    """Rough VMEM footprint: resident weights (counted double-buffered),
    streamed x/out tiles, and f32 intermediates."""
    weights = 2 * (D * H + H * Dout + H + Dout) * w_it
    stream = x_bufs * tm * D * x_it + 2 * tm * Dout * o_it
    interm = (2 * tm * H + tm * Dout) * 4
    return weights + stream + interm


def _normalize_tm(tm, N):
    """Make tm either a multiple of 8 (partial trailing block is fine) or
    exactly N (single full-array block), so the (8,128) BlockSpec rule holds."""
    tm = _round_up(max(1, min(tm, N)), 8)
    return N if tm >= N else tm


def _x_block_spec(tm, D, buffers):
    index_map = lambda i: (i, 0)
    if buffers > 2:
        try:  # deeper pipelining keeps the streamed-tile DMAs back-to-back
            return pl.BlockSpec((tm, D), index_map,
                                pipeline_mode=pl.Buffered(buffers))
        except TypeError:  # older jax without pipeline_mode: default 2-deep
            pass
    return pl.BlockSpec((tm, D), index_map)


def _adaptmlp_kernel(x_ref, w1_ref, b1_ref, w2_ref, b2_ref, o_ref):
    # x tile: (tm, D); weights/biases are full arrays resident in VMEM.
    x = x_ref[...]

    # Linear1: (tm, D) @ (D, H) on the MXU, f32 accumulation.
    h = jnp.dot(x, w1_ref[...], preferred_element_type=jnp.float32)
    h = h + b1_ref[...].astype(jnp.float32)

    # Exact GELU (torch.nn.GELU default): 0.5*x*(1+erf(x/sqrt(2))), kept in f32
    # (safe on v5e, whose VPU/EUP lack bf16 elementwise).
    h = 0.5 * h * (1.0 + lax.erf(h * 0.7071067811865476))

    # Linear2: (tm, H) @ (H, Dout) on the MXU, f32 accumulation.
    # (scale is already folded into w2/b2 by the wrapper.)
    y = jnp.dot(h.astype(w2_ref.dtype), w2_ref[...],
                preferred_element_type=jnp.float32)
    y = y + b2_ref[...].astype(jnp.float32)

    o_ref[...] = y.astype(o_ref.dtype)


def adaptmlp_forward(x, w1, b1, w2, b2, *, scale=1.0, tm=None):
    """x: (B, S, D). w1: (D, H), b1: (H,), w2: (H, Dout), b2: (Dout,)."""
    B, S, D = x.shape
    H = w1.shape[1]
    Dout = w2.shape[1]
    N = B * S

    # Fold the static scale into Linear2 (scale*(h@W2+b2) == h@(scale*W2)+scale*b2),
    # so the kernel never pays a tm x Dout VALU multiply.
    if scale != 1.0:
        w2 = (w2.astype(jnp.float32) * scale).astype(w2.dtype)
        b2 = (b2.astype(jnp.float32) * scale).astype(b2.dtype)

    x_it = jnp.dtype(x.dtype).itemsize
    w_it = jnp.dtype(w1.dtype).itemsize
    o_it = x_it  # output dtype follows x

    vmem_phys = _physical_vmem_bytes()
    budget = (3 * vmem_phys) // 4  # ~25% headroom for Mosaic scratch / relayouts

    if tm is None:
        if N <= 256:
            tm = N  # tiny input: one whole-array grid step
        else:
            # Big tiles amortize the ~0.35us/step grid overhead: 1024 on
            # 128-MiB-VMEM chips (v5e/v6e), 512 on 64-MiB v7x; auto-halve when
            # the footprint would exceed ~75% of physical VMEM (large-D guard).
            tm_max = 1024 if vmem_phys >= (96 << 20) else 512
            while tm_max > 128 and _vmem_need_bytes(
                    tm_max, D, H, Dout, x_it, w_it, o_it, 2) > budget:
                tm_max //= 2
            # Keep >=2 grid steps so v7x's two TensorCores both get work.
            tm = min(tm_max, pl.cdiv(N, 2))
    tm = _normalize_tm(tm, N)

    num_steps = pl.cdiv(N, tm)  # partial trailing block: Pallas clips the writeback
    x_bufs = 3 if (num_steps >= 3 and _vmem_need_bytes(
        tm, D, H, Dout, x_it, w_it, o_it, 3) <= budget) else 2
    vmem_limit = int(budget)  # ~96 MiB on v5e/v6e, ~48 MiB on v7x

    x2 = x.reshape(N, D)
    b1_2 = b1.reshape(1, H)
    b2_2 = b2.reshape(1, Dout)

    # NOTE: Dout < 128 lowers to masked (vst.msk) output stores — accepted for
    # tiny demo shapes; production Dout = dim is lane-dense. H is deliberately
    # NOT padded to 128: the kernel is HBM-bound, so MXU columns are free.
    out2 = pl.pallas_call(
        _adaptmlp_kernel,
        out_shape=jax.ShapeDtypeStruct((N, Dout), x.dtype),
        grid_spec=pltpu.PrefetchScalarGridSpec(
            num_scalar_prefetch=0,
            grid=(num_steps,),
            in_specs=[
                _x_block_spec(tm, D, x_bufs),                 # x tile (streamed)
                pl.BlockSpec((D, H), lambda i: (0, 0)),       # W1 (resident)
                pl.BlockSpec((1, H), lambda i: (0, 0)),       # b1
                pl.BlockSpec((H, Dout), lambda i: (0, 0)),    # W2 (resident)
                pl.BlockSpec((1, Dout), lambda i: (0, 0)),    # b2
            ],
            out_specs=pl.BlockSpec((tm, Dout), lambda i: (i, 0)),
        ),
        compiler_params=pltpu.CompilerParams(
            dimension_semantics=("parallel",),  # v7x shards tiles over 2 TCs
            vmem_limit_bytes=vmem_limit,
        ),
        cost_estimate=pl.CostEstimate(
            flops=int(2 * N * (D * H + H * Dout)),
            transcendentals=int(N * H),
            bytes_accessed=int(N * (D * x_it + Dout * o_it)
                               + (D * H + H * Dout + H + Dout) * w_it),
        ),
    )(x2, w1, b1_2, w2, b2_2)

    return out2.reshape(B, S, Dout)


def _torch_linear_init(key, fan_in, fan_out):
    """Deterministic init mimicking torch.nn.Linear default
    (U(-1/sqrt(fan_in), 1/sqrt(fan_in)) for weight and bias).
    Weight returned as (fan_in, fan_out), i.e. already transposed for x @ W."""
    kw, kb = jax.random.split(key)
    bound = 1.0 / (fan_in ** 0.5)
    w = jax.random.uniform(kw, (fan_in, fan_out), jnp.float32, -bound, bound)
    b = jax.random.uniform(kb, (fan_out,), jnp.float32, -bound, bound)
    return w, b


def reference_forward(x, w1, b1, w2, b2, scale=1.0):
    h = x @ w1 + b1
    h = 0.5 * h * (1.0 + lax.erf(h * 0.7071067811865476))
    y = h @ w2 + b2
    return scale * y


if __name__ == "__main__":
    # Small shapes consistent with AdaptMLP: dim=32, hidden_dim=16, output_dim=dim.
    B, S, D, H = 2, 8, 32, 16
    key = jax.random.PRNGKey(0)
    kx, k1, k2 = jax.random.split(key, 3)

    x = jax.random.normal(kx, (B, S, D), jnp.float32)
    w1, b1 = _torch_linear_init(k1, D, H)    # Linear(dim, hidden_dim)
    w2, b2 = _torch_linear_init(k2, H, D)    # Linear(hidden_dim, dim)

    # 1) Tiny input: whole-array single-step grid.
    out = jax.block_until_ready(adaptmlp_forward(x, w1, b1, w2, b2, scale=1.0))
    ref = reference_forward(x, w1, b1, w2, b2, 1.0)
    assert out.shape == (B, S, D)
    assert jnp.allclose(out, ref, atol=1e-5, rtol=1e-5), "mismatch vs reference"

    # 2) Ragged token count + non-unit scale (folded into W2/b2), no pad/slice.
    x_odd = jax.random.normal(jax.random.PRNGKey(1), (B, 5, D), jnp.float32)
    out_odd = jax.block_until_ready(
        adaptmlp_forward(x_odd, w1, b1, w2, b2, scale=0.5))
    ref_odd = reference_forward(x_odd, w1, b1, w2, b2, 0.5)
    assert out_odd.shape == (B, 5, D)
    assert jnp.allclose(out_odd, ref_odd, atol=1e-5, rtol=1e-5), "tail mismatch"

    # 3) Moderate N: multi-step cdiv grid with a partial trailing block.
    x_big = jax.random.normal(jax.random.PRNGKey(2), (2, 150, D), jnp.float32)
    out_big = jax.block_until_ready(
        adaptmlp_forward(x_big, w1, b1, w2, b2, scale=1.0))
    ref_big = reference_forward(x_big, w1, b1, w2, b2, 1.0)
    assert out_big.shape == (2, 150, D)
    assert jnp.allclose(out_big, ref_big, atol=1e-5, rtol=1e-5), "partial-block mismatch"

    print("KERNEL_OK")
</pallas_src>

<mosaic_0001>
module attributes {stable_mosaic.version = 11 : i64} {
  func.func @_adaptmlp_kernel(%arg0: i32, %arg1: memref<16x32xf32, #tpu.memory_space<vmem>>, %arg2: memref<32x16xf32, #tpu.memory_space<vmem>>, %arg3: memref<1x16xf32, #tpu.memory_space<vmem>>, %arg4: memref<16x32xf32, #tpu.memory_space<vmem>>, %arg5: memref<1x32xf32, #tpu.memory_space<vmem>>, %arg6: memref<16x32xf32, #tpu.memory_space<vmem>>) attributes {dimension_semantics = [#tpu.dimension_semantics<parallel>], iteration_bounds = array<i64: 1>, scalar_prefetch = 0 : i64, scratch_operands = 0 : i64, tpu.core_type = #tpu.core_type<tc>, window_params = [{transform_indices = @transform_0, window_bounds = array<i64: 16, 32>}, {pipeline_mode = #tpu.pipeline_mode<synchronous>, transform_indices = @transform_1, window_bounds = array<i64: 32, 16>}, {pipeline_mode = #tpu.pipeline_mode<synchronous>, transform_indices = @transform_2, window_bounds = array<i64: 1, 16>}, {pipeline_mode = #tpu.pipeline_mode<synchronous>, transform_indices = @transform_3, window_bounds = array<i64: 16, 32>}, {pipeline_mode = #tpu.pipeline_mode<synchronous>, transform_indices = @transform_4, window_bounds = array<i64: 1, 32>}, {transform_indices = @transform_5, window_bounds = array<i64: 16, 32>}]} {
    %c0 = arith.constant 0 : index
    %c0_0 = arith.constant 0 : index
    %0 = vector.load %arg1[%c0, %c0_0] : memref<16x32xf32, #tpu.memory_space<vmem>>, vector<16x32xf32>
    %c0_1 = arith.constant 0 : index
    %c0_2 = arith.constant 0 : index
    %1 = vector.load %arg2[%c0_1, %c0_2] : memref<32x16xf32, #tpu.memory_space<vmem>>, vector<32x16xf32>
    %cst = arith.constant dense<0.000000e+00> : vector<16x16xf32>
    %2 = tpu.matmul %0, %1, %cst {dimension_numbers = #tpu.dot_dimension_numbers<[1], [0], [0], [1], [0, 0, 1, 1], [], []>} : vector<16x32xf32>, vector<32x16xf32>, vector<16x16xf32> -> vector<16x16xf32>
    %c0_3 = arith.constant 0 : index
    %c0_4 = arith.constant 0 : index
    %3 = vector.load %arg3[%c0_3, %c0_4] : memref<1x16xf32, #tpu.memory_space<vmem>>, vector<1x16xf32>
    %4 = vector.broadcast %3 : vector<1x16xf32> to vector<16x16xf32>
    %5 = arith.addf %2, %4 : vector<16x16xf32>
    %cst_5 = arith.constant 5.000000e-01 : f32
    %6 = vector.broadcast %cst_5 : f32 to vector<16x16xf32>
    %7 = arith.mulf %6, %5 : vector<16x16xf32>
    %cst_6 = arith.constant 0.707106769 : f32
    %8 = vector.broadcast %cst_6 : f32 to vector<16x16xf32>
    %9 = arith.mulf %5, %8 : vector<16x16xf32>
    %10 = math.erf %9 : vector<16x16xf32>
    %cst_7 = arith.constant 1.000000e+00 : f32
    %11 = vector.broadcast %cst_7 : f32 to vector<16x16xf32>
    %12 = arith.addf %11, %10 : vector<16x16xf32>
    %13 = arith.mulf %7, %12 : vector<16x16xf32>
    %c0_8 = arith.constant 0 : index
    %c0_9 = arith.constant 0 : index
    %14 = vector.load %arg4[%c0_8, %c0_9] : memref<16x32xf32, #tpu.memory_space<vmem>>, vector<16x32xf32>
    %cst_10 = arith.constant dense<0.000000e+00> : vector<16x32xf32>
    %15 = tpu.matmul %13, %14, %cst_10 {dimension_numbers = #tpu.dot_dimension_numbers<[1], [0], [0], [1], [0, 0, 1, 1], [], []>} : vector<16x16xf32>, vector<16x32xf32>, vector<16x32xf32> -> vector<16x32xf32>
    %c0_11 = arith.constant 0 : index
    %c0_12 = arith.constant 0 : index
    %16 = vector.load %arg5[%c0_11, %c0_12] : memref<1x32xf32, #tpu.memory_space<vmem>>, vector<1x32xf32>
    %17 = vector.broadcast %16 : vector<1x32xf32> to vector<16x32xf32>
    %18 = arith.addf %15, %17 : vector<16x32xf32>
    %c0_13 = arith.constant 0 : index
    %c0_14 = arith.constant 0 : index
    %19 = vector.load %arg6[%c0_13, %c0_14] : memref<16x32xf32, #tpu.memory_space<vmem>>, vector<16x32xf32>
    tpu.vector_store %arg6[%c0_13, %c0_14], %18 {strides = array<i32>} : memref<16x32xf32, #tpu.memory_space<vmem>>, vector<16x32xf32>,
    return
  }
  func.func @transform_0(%arg0: i32) -> (i32, i32) {
    %c0_i32 = arith.constant 0 : i32
    %c0_i32_0 = arith.constant 0 : i32
    return %arg0, %c0_i32 : i32, i32
  }
  func.func @transform_1(%arg0: i32) -> (i32, i32) {
    %c0_i32 = arith.constant 0 : i32
    %c0_i32_0 = arith.constant 0 : i32
    %c0_i32_1 = arith.constant 0 : i32
    return %c0_i32, %c0_i32_0 : i32, i32
  }
  func.func @transform_2(%arg0: i32) -> (i32, i32) {
    %c0_i32 = arith.constant 0 : i32
    %c0_i32_0 = arith.constant 0 : i32
    %c0_i32_1 = arith.constant 0 : i32
    return %c0_i32, %c0_i32_0 : i32, i32
  }
  func.func @transform_3(%arg0: i32) -> (i32, i32) {
    %c0_i32 = arith.constant 0 : i32
    %c0_i32_0 = arith.constant 0 : i32
    %c0_i32_1 = arith.constant 0 : i32
    return %c0_i32, %c0_i32_0 : i32, i32
  }
  func.func @transform_4(%arg0: i32) -> (i32, i32) {
    %c0_i32 = arith.constant 0 : i32
    %c0_i32_0 = arith.constant 0 : i32
    %c0_i32_1 = arith.constant 0 : i32
    return %c0_i32, %c0_i32_0 : i32, i32
  }
  func.func @transform_5(%arg0: i32) -> (i32, i32) {
    %c0_i32 = arith.constant 0 : i32
    %c0_i32_0 = arith.constant 0 : i32
    return %arg0, %c0_i32 : i32, i32
  }
}

</mosaic_0001>

<llo_original>
// kernel: tpu_custom_call.1
$region0: #{tpu_custom_call.1}
  #allocation0 [shape = 'u32[]', space=smem, size = 0x4, offset = 0x4, fixed_abs, tag = 'smem constant byte address 0x4 - core index']
  #allocation1 [shape = 'u32[144,128]{1,0:T(1,128)}', space=vmem, size = 0x12000, scoped, tag = 'internal scratch']
  %s0 = inlined_call_operand.vmem [shape: f32[16,32], index: 0, kind: input, shape index: {}]
  %s1 = inlined_call_operand.vmem [shape: f32[32,16], index: 1, kind: input, shape index: {}]
  %s2 = inlined_call_operand.vmem [shape: f32[1,16], index: 2, kind: input, shape index: {}]
  %s3 = inlined_call_operand.vmem [shape: f32[16,32], index: 3, kind: input, shape index: {}]
  %s4 = inlined_call_operand.vmem [shape: f32[1,32], index: 4, kind: input, shape index: {}]
  %s5 = inlined_call_operand.hbm [shape: f32[16,32], index: 5, kind: output, shape index: {}]
  %s6 = sld [smem:[#allocation0]]
  $region30: #{tpu_custom_call.1} parent=0
    _
  %s8 = ssub.s32 1, %s6
  %s9 = scalar_select 0, %s8, %s6
  $region1: #{tpu_custom_call.1} parent=0
    #allocation2 [shape = 'u8[8192]{0}', space=vmem, size = 0x2000, scoped, tag = 'output window, operand 0, single buffered']
    #allocation3 [shape = 's32[1]{0}', space=sflag, size = 0x4, scoped, tag = 'scoped memory for tpu_custom_call.1']
    %10 = vsyncpa [#allocation3], 0
    // Predicated region
    $region2: #{tpu_custom_call.1} parent=1 // pred_check
      _
    $region3: #{tpu_custom_call.1} parent=1 // pred_check_branch
      %12 = sbr.rel (0) target = $region5
    $region4: #{tpu_custom_call.1} parent=1 // pred_region
      _
    $region5: #{tpu_custom_call.1} parent=1 // pred_fallthru
      _
    // Predicated region
    $region6: #{tpu_custom_call.1} parent=1 // pred_check
      _
    $region7: #{tpu_custom_call.1} parent=1 // pred_check_branch
      %14 = sbr.rel (0) target = $region9
    $region8: #{tpu_custom_call.1} parent=1 // pred_region
      _
    $region9: #{tpu_custom_call.1} parent=1 // pred_fallthru
      _
    // Predicated region
    $region10: #{tpu_custom_call.1} parent=1 // pred_check
      _
    $region11: #{tpu_custom_call.1} parent=1 // pred_check_branch
      %16 = sbr.rel (0) target = $region13
    $region12: #{tpu_custom_call.1} parent=1 // pred_region
      _
    $region13: #{tpu_custom_call.1} parent=1 // pred_fallthru
      _
    // Predicated region
    $region14: #{tpu_custom_call.1} parent=1 // pred_check
      _
    $region15: #{tpu_custom_call.1} parent=1 // pred_check_branch
      %18 = sbr.rel (0) target = $region17
    $region16: #{tpu_custom_call.1} parent=1 // pred_region
      _
    $region17: #{tpu_custom_call.1} parent=1 // pred_fallthru
      _
    // Predicated region
    $region18: #{tpu_custom_call.1} parent=1 // pred_check
      _
    $region19: #{tpu_custom_call.1} parent=1 // pred_check_branch
      %20 = sbr.rel (0) target = $region21
    $region20: #{tpu_custom_call.1} parent=1 // pred_region
      _
    $region21: #{tpu_custom_call.1} parent=1 // pred_fallthru
      _
    %v21 = vld [vmem:[%s0] sm:$0xff]
    %v22 = vld [vmem:[%s0 + $0x8] sm:$0xff]
    %v23 = vld [vmem:[%s1] sm:$0xff]
    %v24 = vld [vmem:[%s1 + $0x8] sm:$0xff]
    %v25 = vld [vmem:[%s1 + $0x10] sm:$0xff]
    %v26 = vld [vmem:[%s1 + $0x18] sm:$0xff]
    %v27 = vld [vmem:[%s2] sm:$0x1]
    %v29 = vlaneseq
    %v30 = vshrl.u32 %v29, 7
    %v31 = vsub.s32 0, %v30
    %v32 = vrot.slane %v27, %v31
    %vm34 = vcmask 261120
    %v36 = vsel %vm34, %v21, 0
    %v39 = vsel %vm34, %v22, 0
    %41 = vmatprep.subr.mxu0 0.0
    %42 = vmatpush1.msra.mxu0 %v23
    %43 = vmatprep.subr.mxu0 0.0
    %44 = vmatpush1.msra.mxu0 %v24
    %45 = vmatprep.subr.mxu0 0.0
    %46 = vmatpush1.msra.mxu0 %v25
    %47 = vmatprep.subr.mxu0 0.0
    %48 = vmatpush1.msra.mxu0 %v26
    %49 = vmatprep.subr.mxu0 0.0
    %50 = vmatpush1.msra.mxu0 0.0
    %51 = vmatprep.subr.mxu0 0.0
    %52 = vmatpush1.msra.mxu0 0.0
    %53 = vmatprep.subr.mxu0 0.0
    %54 = vmatpush1.msra.mxu0 0.0
    %55 = vmatprep.subr.mxu0 0.0
    %56 = vmatpush1.msra.mxu0 0.0
    %57 = vmatprep.subr.mxu0 0.0
    %58 = vmatpush1.msra.mxu0 0.0
    %59 = vmatprep.subr.mxu0 0.0
    %60 = vmatpush1.msra.mxu0 0.0
    %61 = vmatprep.subr.mxu0 0.0
    %62 = vmatpush1.msra.mxu0 0.0
    %63 = vmatprep.subr.mxu0 0.0
    %64 = vmatpush1.msra.mxu0 0.0
    %65 = vmatprep.subr.mxu0 0.0
    %66 = vmatpush1.msra.mxu0 0.0
    %67 = vmatprep.subr.mxu0 0.0
    %68 = vmatpush1.msra.mxu0 0.0
    %69 = vmatprep.subr.mxu0 0.0
    %70 = vmatpush1.msra.mxu0 0.0
    %71 = vmatprep.subr.mxu0 0.0
    %72 = vmatpush1.msra.mxu0 0.0
    %73 = vmatprep.subr.mxu0 0.0
    %74 = vmatpush1.msra.mxu0 0.0
    %75 = vmatprep.subr.mxu0 0.0
    %76 = vmatpush1.msra.mxu0 0.0
    %77 = vmatprep.subr.mxu0 0.0
    %78 = vmatpush1.msra.mxu0 0.0
    %79 = vmatprep.subr.mxu0 0.0
    %80 = vmatpush1.msra.mxu0 0.0
    %81 = vmatprep.subr.mxu0 0.0
    %82 = vmatpush1.msra.mxu0 0.0
    %83 = vmatprep.subr.mxu0 0.0
    %84 = vmatpush1.msra.mxu0 0.0
    %85 = vmatprep.subr.mxu0 0.0
    %86 = vmatpush1.msra.mxu0 0.0
    %87 = vmatprep.subr.mxu0 0.0
    %88 = vmatpush1.msra.mxu0 0.0
    %89 = vmatprep.subr.mxu0 0.0
    %90 = vmatpush1.msra.mxu0 0.0
    %91 = vmatprep.subr.mxu0 0.0
    %92 = vmatpush1.msra.mxu0 0.0
    %93 = vmatprep.subr.mxu0 0.0
    %94 = vmatpush1.msra.mxu0 0.0
    %95 = vmatprep.subr.mxu0 0.0
    %96 = vmatpush1.msra.mxu0 0.0
    %97 = vmatprep.subr.mxu0 0.0
    %98 = vmatpush1.msra.mxu0 0.0
    %99 = vmatprep.subr.mxu0 0.0
    %100 = vmatpush1.msra.mxu0 0.0
    %101 = vmatprep.subr.mxu0 0.0
    %102 = vmatpush1.msra.mxu0 0.0
    %103 = vmatprep.subr.mxu0 0.0
    %104 = vmatpush1.msra.mxu0 0.0
    %105 = vmatprep.mubr.f32.mxu0 0.0
    %106 = vmatmul.mubr.f32.gmra.mrb[0].mxu0 %v36
    %v107 = vpop.f32.mrb[0].mxu0
    %v108 = vadd.f32 %v32, %v107
    %v109 = vpop.f32.mrb[0].mxu0
    %110 = vmatprep.mubr.f32.mxu0 0.0
    %111 = vmatmul.mubr.f32.gmra.mrb[0].mxu0 %v39
    %v112 = vpop.f32.mrb[0].mxu0
    %v113 = vadd.f32 %v32, %v112
    %v114 = vpop.f32.mrb[0].mxu0
    %115 = vdwg.mxu0
    %v116 = vmul.f32 %v108, 0.5
    %v117 = vmul.f32 %v113, 0.5
    %v118 = vmul.f32 %v108, 0.70710677
    %v119 = vmul.f32 %v113, 0.70710677
    %v120 = verf.f32.pop %v118
    %v121 = verf.f32.pop %v119
    %v122 = vadd.f32 %v120, 1.0
    %v123 = vadd.f32 %v121, 1.0
    %v124 = vmul.f32 %v116, %v122
    %v125 = vmul.f32 %v117, %v123
    %v126 = vld [vmem:[%s3] sm:$0xff]
    %v127 = vld [vmem:[%s3 + $0x8] sm:$0xff]
    %v128 = vld [vmem:[%s4] sm:$0x1]
    %v130 = vlaneseq
    %v131 = vshrl.u32 %v130, 7
    %v132 = vsub.s32 0, %v131
    %v133 = vrot.slane %v128, %v132
    %vm135 = vcmask 130048
    %v137 = vsel %vm135, %v124, 0
    %v140 = vsel %vm135, %v125, 0
    %142 = vmatprep.subr.mxu0 0.0
    %143 = vmatpush1.msra.mxu0 %v126
    %144 = vmatprep.subr.mxu0 0.0
    %145 = vmatpush1.msra.mxu0 %v127
    %146 = vmatprep.subr.mxu0 0.0
    %147 = vmatpush1.msra.mxu0 0.0
    %148 = vmatprep.subr.mxu0 0.0
    %149 = vmatpush1.msra.mxu0 0.0
    %150 = vmatprep.subr.mxu0 0.0
    %151 = vmatpush1.msra.mxu0 0.0
    %152 = vmatprep.subr.mxu0 0.0
    %153 = vmatpush1.msra.mxu0 0.0
    %154 = vmatprep.subr.mxu0 0.0
    %155 = vmatpush1.msra.mxu0 0.0
    %156 = vmatprep.subr.mxu0 0.0
    %157 = vmatpush1.msra.mxu0 0.0
    %158 = vmatprep.subr.mxu0 0.0
    %159 = vmatpush1.msra.mxu0 0.0
    %160 = vmatprep.subr.mxu0 0.0
    %161 = vmatpush1.msra.mxu0 0.0
    %162 = vmatprep.subr.mxu0 0.0
    %163 = vmatpush1.msra.mxu0 0.0
    %164 = vmatprep.subr.mxu0 0.0
    %165 = vmatpush1.msra.mxu0 0.0
    %166 = vmatprep.subr.mxu0 0.0
    %167 = vmatpush1.msra.mxu0 0.0
    %168 = vmatprep.subr.mxu0 0.0
    %169 = vmatpush1.msra.mxu0 0.0
    %170 = vmatprep.subr.mxu0 0.0
    %171 = vmatpush1.msra.mxu0 0.0
    %172 = vmatprep.subr.mxu0 0.0
    %173 = vmatpush1.msra.mxu0 0.0
    %174 = vmatprep.subr.mxu0 0.0
    %175 = vmatpush1.msra.mxu0 0.0
    %176 = vmatprep.subr.mxu0 0.0
    %177 = vmatpush1.msra.mxu0 0.0
    %178 = vmatprep.subr.mxu0 0.0
    %179 = vmatpush1.msra.mxu0 0.0
    %180 = vmatprep.subr.mxu0 0.0
    %181 = vmatpush1.msra.mxu0 0.0
    %182 = vmatprep.subr.mxu0 0.0
    %183 = vmatpush1.msra.mxu0 0.0
    %184 = vmatprep.subr.mxu0 0.0
    %185 = vmatpush1.msra.mxu0 0.0
    %186 = vmatprep.subr.mxu0 0.0
    %187 = vmatpush1.msra.mxu0 0.0
    %188 = vmatprep.subr.mxu0 0.0
    %189 = vmatpush1.msra.mxu0 0.0
    %190 = vmatprep.subr.mxu0 0.0
    %191 = vmatpush1.msra.mxu0 0.0
    %192 = vmatprep.subr.mxu0 0.0
    %193 = vmatpush1.msra.mxu0 0.0
    %194 = vmatprep.subr.mxu0 0.0
    %195 = vmatpush1.msra.mxu0 0.0
    %196 = vmatprep.subr.mxu0 0.0
    %197 = vmatpush1.msra.mxu0 0.0
    %198 = vmatprep.subr.mxu0 0.0
    %199 = vmatpush1.msra.mxu0 0.0
    %200 = vmatprep.subr.mxu0 0.0
    %201 = vmatpush1.msra.mxu0 0.0
    %202 = vmatprep.subr.mxu0 0.0
    %203 = vmatpush1.msra.mxu0 0.0
    %204 = vmatprep.subr.mxu0 0.0
    %205 = vmatpush1.msra.mxu0 0.0
    %206 = vmatprep.mubr.f32.mxu0 0.0
    %207 = vmatmul.mubr.f32.gmra.mrb[0].mxu0 %v137
    %v208 = vpop.f32.mrb[0].mxu0
    %v209 = vadd.f32 %v133, %v208
    %v210 = vpop.f32.mrb[0].mxu0
    %211 = vmatprep.mubr.f32.mxu0 0.0
    %212 = vmatmul.mubr.f32.gmra.mrb[0].mxu0 %v140
    %v213 = vpop.f32.mrb[0].mxu0
    %v214 = vadd.f32 %v133, %v213
    %v215 = vpop.f32.mrb[0].mxu0
    %216 = vdwg.mxu0
    %217 = vst.msk [vmem:[#allocation2] sm:$0xff] %vm34, %v209
    %218 = vst.msk [vmem:[#allocation2 + $0x8] sm:$0xff] %vm34, %v214
    // Predicated region
    $region22: #{tpu_custom_call.1} parent=1 // pred_check
      _
    $region23: #{tpu_custom_call.1} parent=1 // pred_check_branch
      %220 = sbr.rel (0) target = $region25
    $region24: #{tpu_custom_call.1} parent=1 // pred_region
      %s222 = ssub.s32 256, 256
      %223 = vsyncadd [#allocation3], %s222
      %s224 = sshll.u32 [#allocation2], 4
      %s225 = int_to_ptr.vmem [resolvable:$true] %s224
      %230 = dma.vmem_to_hbm [thread:$0]  %s225, 256, %s5, [#allocation3], 128, 128, 8
    $region25: #{tpu_custom_call.1} parent=1 // pred_fallthru
      _
    // Predicated region
    $region26: #{tpu_custom_call.1} parent=1 // pred_check
      _
    $region27: #{tpu_custom_call.1} parent=1 // pred_check_branch
      %232 = sbr.rel (0) target = $region29
    $region28: #{tpu_custom_call.1} parent=1 // pred_region
      %233 = dma.done [#allocation3], 256
    $region29: #{tpu_custom_call.1} parent=1 // pred_fallthru
      _
    %234 = vsyncpa [#allocation3], 1

</llo_original>
